<compile_context>
chip_gen: v6e
topology: v6e:2x2x1
jax: 0.10.0
libtpu: 0.0.40
codegen_flags: <defaults>
</compile_context>

<pallas_src>
import jax
import jax.numpy as jnp
from jax.experimental import pallas as pl
from jax.experimental.pallas import tpu as pltpu


def _identity_kernel(x_ref, o_ref):
    # No compute: the reference forward() body is empty.
    o_ref[...] = x_ref[...]


def _native_sublane(itemsize: int) -> int:
    # Native packed-sublane tile height: f32 -> 8, bf16 -> 16, int8/fp8 -> 32.
    return max(8, 32 // itemsize)


def _round_up(n: int, m: int) -> int:
    return -(-n // m) * m


_PER_BUFFER_TILE_BYTES = 8 * 1024 * 1024   # 4 live double-buffered bufs ~ 32 MiB
_VMEM_LIMIT_BYTES = 48 * 1024 * 1024       # comfortably under v7x's 64 MiB/TC


def pallas_identity_copy(x: jax.Array) -> jax.Array:
    """Materialized identity copy of x through a Pallas TPU kernel."""
    n = x.size
    if n == 0:
        return x
    itemsize = jnp.dtype(x.dtype).itemsize
    sub = _native_sublane(itemsize)

    # Lane-dense slab [rows, lanes]: pick the widest lane count whose full
    # (sub x lanes) tile divides n exactly, else fall back to 128 lanes with
    # flat zero-padding (sliced off afterwards).
    lanes = next((c for c in (1024, 512, 256, 128) if n % (c * sub) == 0), 128)
    rows = -(-n // lanes)
    rows = _round_up(rows, sub)
    padded_elems = rows * lanes

    flat = x.reshape(-1)
    if padded_elems != n:
        flat = jnp.pad(flat, (0, padded_elems - n))
    x2d = flat.reshape(rows, lanes)

    # Tile rows: dtype-native sublane multiple, capped by the per-buffer cap.
    max_tile_rows = max(
        sub, (_PER_BUFFER_TILE_BYTES // (lanes * itemsize)) // sub * sub
    )
    tile_rows = min(rows, max_tile_rows)

    # v7x has 2 TensorCores: guarantee >= 2 grid steps for inputs big enough
    # that the split pays for the extra per-step overhead.
    total_bytes = n * itemsize
    if total_bytes >= (2 << 20) and tile_rows >= rows:
        tile_rows = max(sub, _round_up(-(-rows // 2), sub))

    grid = (pl.cdiv(rows, tile_rows),)

    out2d = pl.pallas_call(
        _identity_kernel,
        out_shape=jax.ShapeDtypeStruct((rows, lanes), x.dtype),
        grid=grid,
        in_specs=[pl.BlockSpec((tile_rows, lanes), lambda i: (i, 0))],
        out_specs=pl.BlockSpec((tile_rows, lanes), lambda i: (i, 0)),
        compiler_params=pltpu.CompilerParams(
            dimension_semantics=("parallel",),
            vmem_limit_bytes=_VMEM_LIMIT_BYTES,
        ),
        cost_estimate=pl.CostEstimate(
            flops=0, transcendentals=0, bytes_accessed=2 * total_bytes),
    )(x2d)

    out = out2d.reshape(-1)
    if padded_elems != n:
        out = out[:n]
    return out.reshape(x.shape)


def muscle_marla_forward(x: jax.Array) -> jax.Array:
    # TODO(synk): the reference forward() body is `pass` (returns None, does no
    # compute); the cheapest faithful tensor semantics is the untouched input,
    # so no kernel launch or HBM traffic is spent on the forward path.
    return x


if __name__ == "__main__":
    key = jax.random.PRNGKey(0)
    # Small NCHW-style input consistent with (input_shape, output_shape).
    x = jax.random.normal(key, (2, 4, 16, 16), dtype=jnp.float32)

    # Module forward: no-op pass-through.
    y = muscle_marla_forward(x)
    assert y.shape == x.shape and y.dtype == x.dtype

    # Exercise the real Pallas kernel once and block on its result.
    copy_fn = jax.jit(pallas_identity_copy)
    y_copy = copy_fn(x)
    jax.block_until_ready(y_copy)

    assert y_copy.shape == x.shape and y_copy.dtype == x.dtype
    assert bool(jnp.array_equal(y_copy, x))
    assert bool(jnp.array_equal(y, x))

    print("KERNEL_OK")
</pallas_src>

<mosaic_0001>
module attributes {stable_mosaic.version = 11 : i64} {
  func.func @_identity_kernel(%arg0: i32, %arg1: memref<8x256xf32, #tpu.memory_space<vmem>>, %arg2: memref<8x256xf32, #tpu.memory_space<vmem>>) attributes {dimension_semantics = [#tpu.dimension_semantics<parallel>], iteration_bounds = array<i64: 1>, scalar_prefetch = 0 : i64, scratch_operands = 0 : i64, tpu.core_type = #tpu.core_type<tc>, window_params = [{transform_indices = @transform_0, window_bounds = array<i64: 8, 256>}, {transform_indices = @transform_1, window_bounds = array<i64: 8, 256>}]} {
    %c0 = arith.constant 0 : index
    %c0_0 = arith.constant 0 : index
    %0 = vector.load %arg1[%c0, %c0_0] : memref<8x256xf32, #tpu.memory_space<vmem>>, vector<8x256xf32>
    %c0_1 = arith.constant 0 : index
    %c0_2 = arith.constant 0 : index
    %1 = vector.load %arg2[%c0_1, %c0_2] : memref<8x256xf32, #tpu.memory_space<vmem>>, vector<8x256xf32>
    tpu.vector_store %arg2[%c0_1, %c0_2], %0 {strides = array<i32>} : memref<8x256xf32, #tpu.memory_space<vmem>>, vector<8x256xf32>,
    return
  }
  func.func @transform_0(%arg0: i32) -> (i32, i32) {
    %c0_i32 = arith.constant 0 : i32
    %c0_i32_0 = arith.constant 0 : i32
    return %arg0, %c0_i32 : i32, i32
  }
  func.func @transform_1(%arg0: i32) -> (i32, i32) {
    %c0_i32 = arith.constant 0 : i32
    %c0_i32_0 = arith.constant 0 : i32
    return %arg0, %c0_i32 : i32, i32
  }
}

</mosaic_0001>

<llo_original>
// kernel: pallas_identity_copy.1
$region0: #{pallas_identity_copy.1}
  #allocation0 [shape = 'u32[]', space=smem, size = 0x4, offset = 0x4, fixed_abs, tag = 'smem constant byte address 0x4 - core index']
  #allocation1 [shape = 'u32[144,128]{1,0:T(1,128)}', space=vmem, size = 0x12000, scoped, tag = 'internal scratch']
  %s0 = inlined_call_operand.vmem [shape: f32[8,256], index: 0, kind: input, shape index: {}]
  %s1 = inlined_call_operand.vmem [shape: f32[8,256], index: 1, kind: output, shape index: {}]
  %s2 = sld [smem:[#allocation0]]
  $region14: #{pallas_identity_copy.1} parent=0
    _
  %s4 = ssub.s32 1, %s2
  %s5 = scalar_select 0, %s4, %s2
  // Predicated region
  $region2: #{pallas_identity_copy.1} parent=0 // pred_check
    _
  $region3: #{pallas_identity_copy.1} parent=0 // pred_check_branch
    %7 = sbr.rel (0) target = $region5
  $region4: #{pallas_identity_copy.1} parent=0 // pred_region
    _
  $region5: #{pallas_identity_copy.1} parent=0 // pred_fallthru
    _
  %v8 = vld [vmem:[%s0] sm:$0xff]
  %v9 = vld [vmem:[%s0 + $0x8] sm:$0xff]
  %10 = vst [vmem:[%s1] sm:$0xff] %v8
  %11 = vst [vmem:[%s1 + $0x8] sm:$0xff] %v9
  // Predicated region
  $region6: #{pallas_identity_copy.1} parent=0 // pred_check
    _
  $region7: #{pallas_identity_copy.1} parent=0 // pred_check_branch
    %13 = sbr.rel (0) target = $region9
  $region8: #{pallas_identity_copy.1} parent=0 // pred_region
    _
  $region9: #{pallas_identity_copy.1} parent=0 // pred_fallthru
    _
  // Predicated region
  $region10: #{pallas_identity_copy.1} parent=0 // pred_check
    _
  $region11: #{pallas_identity_copy.1} parent=0 // pred_check_branch
    %15 = sbr.rel (0) target = $region13
  $region12: #{pallas_identity_copy.1} parent=0 // pred_region
    _
  $region13: #{pallas_identity_copy.1} parent=0 // pred_fallthru
    _

</llo_original>
